<compile_context>
chip_gen: v7x
topology: tpu7x:2x2x1
jax: 0.10.0
libtpu: 0.0.40
codegen_flags: <defaults>
</compile_context>

<pallas_src>
import jax
import jax.numpy as jnp
from jax import lax
from jax.experimental import pallas as pl
from jax.experimental.pallas import tpu as pltpu


def _round_up(n, m):
    return pl.cdiv(n, m) * m


def _block_diag(a, b):
    ra, ca = a.shape
    rb, cb = b.shape
    top = jnp.concatenate([a, jnp.zeros((ra, cb), a.dtype)], axis=1)
    bot = jnp.concatenate([jnp.zeros((rb, ca), b.dtype), b], axis=1)
    return jnp.concatenate([top, bot], axis=0)


# -----------------------------------------------------------------------------
# Activations (mirror of the module's get_activation).  Unknown names fall
# through to identity, exactly like activations.get(name, nn.Identity()).
# Only TPU-lowering-safe primitives are used (maximum/where/exp/tanh).
# -----------------------------------------------------------------------------
def _act(v, name):
    if name == 'ReLU':
        return jnp.maximum(v, 0.0)
    if name == 'LeakyReLU':
        return jnp.where(v >= 0.0, v, 0.01 * v)
    if name == 'ELU':
        return jnp.where(v >= 0.0, v, jnp.exp(v) - 1.0)
    if name == 'Tanh':
        return jnp.tanh(v)
    if name == 'Sigmoid':
        # numerically-stable logistic via tanh (EUP-friendly, always supported)
        return 0.5 * (jnp.tanh(0.5 * v) + 1.0)
    return v  # None / 'Identity' / unknown -> identity (PyTorch behavior)


def _split_act(h, n_scale_rows, name_s, name_t):
    """Apply (possibly different) activations to the stacked [scale; translate] rows."""
    if name_s == name_t:
        return _act(h, name_s)
    rows = lax.broadcasted_iota(jnp.int32, h.shape, 0)
    return jnp.where(rows < n_scale_rows, _act(h, name_s), _act(h, name_t))


# -----------------------------------------------------------------------------
# Pallas kernel factory.  Batch is on the lane (last) axis.
#   xT_ref : (input_dim,     TILE_B) f32   rows [0:half) = x1, [half:) = x2
#   yT_ref : (condition_dim, TILE_B) f32
#   w1x    : (Hs1+Ht1, half_dim)     bf16  \ layer 1 of scale|translate nets,
#   w1y    : (Hs1+Ht1, condition_dim)bf16  / stacked on out-dim, split over [x1|y]
#   b1     : (Hs1+Ht1, 1)            f32
#   w_l,b_l: block-diagonal fused deeper layers (last one maps to 2*x2_dim rows)
#   zT_ref : (input_dim, TILE_B)     f32   full z tile (x1 passthrough + z2)
#   ld_ref : (1, TILE_B)             f32   log|det J| = sum_j s_j
# `hidden_cfg` is a static tuple of (n_scale_rows, act_scale, act_translate)
# per hidden layer; out_act_* are the per-net output activations.
# -----------------------------------------------------------------------------
def _make_coupling_kernel(half_dim, x2_dim, hidden_cfg, out_act_s, out_act_t):
    def kernel(*refs):
        xT_ref, yT_ref = refs[0], refs[1]
        w1x_ref, w1y_ref, b1_ref = refs[2], refs[3], refs[4]
        layer_refs = refs[5:-2]              # (w, b) pairs for layers 2..L
        zT_ref, ld_ref = refs[-2], refs[-1]

        x1T = xT_ref[:half_dim, :]           # (half_dim, TILE_B) f32
        x2T = xT_ref[half_dim:, :]           # (x2_dim,  TILE_B) f32
        yT = yT_ref[...]

        w1x = w1x_ref[...]
        w1y = w1y_ref[...]
        mxu_dtype = w1x.dtype

        # Layer 1 of both nets, fused; the [x1, y] concat becomes two matmuls.
        h = (jnp.dot(w1x, x1T.astype(mxu_dtype), preferred_element_type=jnp.float32)
             + jnp.dot(w1y, yT.astype(mxu_dtype), preferred_element_type=jnp.float32)
             + b1_ref[...])
        h = _split_act(h, *hidden_cfg[0])

        n_rest = len(layer_refs) // 2
        for l in range(n_rest):
            w = layer_refs[2 * l][...]
            b = layer_refs[2 * l + 1][...]
            h = jnp.dot(w, h.astype(w.dtype), preferred_element_type=jnp.float32) + b
            if l < n_rest - 1:
                h = _split_act(h, *hidden_cfg[l + 1])   # hidden activation

        s = _act(h[:x2_dim, :], out_act_s)   # scale-net output activation
        t = _act(h[x2_dim:, :], out_act_t)   # translate-net output activation

        zT_ref[:half_dim, :] = x1T                       # z1 = x1 (passthrough)
        zT_ref[half_dim:, :] = x2T * jnp.exp(s) + t      # z2 = x2*exp(s) + t
        ld_ref[...] = jnp.sum(s, axis=0, keepdims=True)  # log|det J|

    return kernel


# -----------------------------------------------------------------------------
# Factory mirroring the nn.Module constructor.  Returns (init, pack, forward).
# All shape/activation constants are static Python values captured by closure.
# -----------------------------------------------------------------------------
def make_affine_coupling(input_dim, condition_dim,
                         scale_hidden_layers, scale_activations, scale_output_activation,
                         translate_hidden_layers, translate_activations, translate_output_activation,
                         batch_tile=8192, mxu_dtype=jnp.bfloat16):
    assert input_dim >= 2, "coupling needs at least one transformed dimension"
    assert batch_tile % 128 == 0, "batch tile must be a multiple of 128 (lane width)"
    assert len(scale_hidden_layers) == len(translate_hidden_layers) >= 1, (
        "kernel fuses the two conditioner nets layer-by-layer; depths must match")

    half_dim = (input_dim + 1) // 2
    x2_dim = input_dim - half_dim

    def _hact(acts, idx):
        return acts[idx] if idx < len(acts) else None

    hidden_cfg = tuple(
        (scale_hidden_layers[i], _hact(scale_activations, i), _hact(translate_activations, i))
        for i in range(len(scale_hidden_layers)))

    kernel = _make_coupling_kernel(half_dim, x2_dim, hidden_cfg,
                                   scale_output_activation, translate_output_activation)

    # --- parameter init (PyTorch nn.Linear layout: W (out, in), b (out,)) ---
    def init_params(key):
        in_size = half_dim + condition_dim

        def init_net(k, hidden):
            sizes = [in_size] + list(hidden) + [x2_dim]
            layers = []
            for i in range(len(sizes) - 1):
                k, kw, kb = jax.random.split(k, 3)
                bound = 1.0 / (sizes[i] ** 0.5)
                W = jax.random.uniform(kw, (sizes[i + 1], sizes[i]), jnp.float32, -bound, bound)
                b = jax.random.uniform(kb, (sizes[i + 1],), jnp.float32, -bound, bound)
                layers.append((W, b))
            return layers

        ks, kt = jax.random.split(key)
        return {"scale": init_net(ks, scale_hidden_layers),
                "translate": init_net(kt, translate_hidden_layers)}

    # --- fuse the two nets into the kernel layout (bf16 weights, f32 biases) ---
    def pack_params(params):
        scale, trans = params["scale"], params["translate"]
        assert len(scale) == len(trans) and len(scale) >= 2

        Ws1, bs1 = scale[0]
        Wt1, bt1 = trans[0]
        W1 = jnp.concatenate([Ws1, Wt1], axis=0)             # (Hs1+Ht1, half+cond)
        flat = [W1[:, :half_dim].astype(mxu_dtype),           # acts on x1
                W1[:, half_dim:].astype(mxu_dtype),           # acts on y
                jnp.concatenate([bs1, bt1])[:, None].astype(jnp.float32)]
        for (Ws, bs), (Wt, bt) in zip(scale[1:], trans[1:]):
            flat.append(_block_diag(Ws, Wt).astype(mxu_dtype))
            flat.append(jnp.concatenate([bs, bt])[:, None].astype(jnp.float32))
        return tuple(flat)

    # --- forward wrapper ---
    @jax.jit
    def forward(kernel_params, x, y):
        B = x.shape[0]
        tile_b = min(batch_tile, _round_up(B, 128))
        Bp = _round_up(B, tile_b)
        if Bp != B:
            x = jnp.pad(x, ((0, Bp - B), (0, 0)))
            y = jnp.pad(y, ((0, Bp - B), (0, 0)))

        xT = x.T                                  # (input_dim,     Bp)
        yT = y.T                                  # (condition_dim, Bp)

        act_spec_x = pl.BlockSpec((input_dim, tile_b), lambda i: (0, i))
        act_spec_y = pl.BlockSpec((condition_dim, tile_b), lambda i: (0, i))
        weight_specs = [pl.BlockSpec(w.shape, lambda i: (0, 0)) for w in kernel_params]

        zT, ldT = pl.pallas_call(
            kernel,
            grid=(Bp // tile_b,),
            in_specs=[act_spec_x, act_spec_y] + weight_specs,
            out_specs=(pl.BlockSpec((input_dim, tile_b), lambda i: (0, i)),
                       pl.BlockSpec((1, tile_b), lambda i: (0, i))),
            out_shape=(jax.ShapeDtypeStruct((input_dim, Bp), jnp.float32),
                       jax.ShapeDtypeStruct((1, Bp), jnp.float32)),
            compiler_params=pltpu.CompilerParams(
                dimension_semantics=("parallel",)),
        )(xT, yT, *kernel_params)

        z = zT.T[:B]                              # (B, input_dim)
        logdet = ldT[0, :B]                       # (B,)
        return z, logdet

    return init_params, pack_params, forward


# -----------------------------------------------------------------------------
# Pure-JAX reference mirroring the PyTorch forward.  mxu_dtype=bf16 mirrors the
# kernel's MXU operand precision; mxu_dtype=None is the pure-f32 reference.
# -----------------------------------------------------------------------------
def reference_forward(params, x, y, half_dim,
                      scale_activations, scale_output_activation,
                      translate_activations, translate_output_activation,
                      mxu_dtype=None):
    x1 = x[:, :half_dim]
    x2 = x[:, half_dim:]
    cond = jnp.concatenate([x1, y], axis=1)

    def net(layers, acts, out_act):
        h = cond
        for idx, (W, b) in enumerate(layers):
            if mxu_dtype is None:
                a, Wd = h, W
            else:
                a, Wd = h.astype(mxu_dtype), W.astype(mxu_dtype)
            h = jnp.dot(a, Wd.T, preferred_element_type=jnp.float32) + b
            if idx < len(layers) - 1:
                h = _act(h, acts[idx] if idx < len(acts) else None)
        return _act(h, out_act)

    s = net(params["scale"], scale_activations, scale_output_activation)
    t = net(params["translate"], translate_activations, translate_output_activation)
    z2 = x2 * jnp.exp(s) + t
    z = jnp.concatenate([x1, z2], axis=1)
    return z, jnp.sum(s, axis=1)


if __name__ == "__main__":
    key = jax.random.PRNGKey(0)
    kp, kx, ky = jax.random.split(key, 3)

    # ---- Config 1: standard cINN setup (ReLU hidden, Tanh scale output). ----
    # Odd input_dim exercises the asymmetric split; batch_tile=128 with B=256
    # exercises a 2-step grid (production default tile is 8192).
    B, input_dim, condition_dim = 256, 7, 4
    half_dim = (input_dim + 1) // 2
    s_hidden, t_hidden = [32, 32], [32, 32]
    s_acts, t_acts = ['ReLU', 'ReLU'], ['ReLU', 'ReLU']

    init_fn, pack_fn, forward = make_affine_coupling(
        input_dim, condition_dim,
        s_hidden, s_acts, 'Tanh',
        t_hidden, t_acts, None,
        batch_tile=128)

    params = init_fn(kp)
    kparams = pack_fn(params)
    x = jax.random.normal(kx, (B, input_dim), jnp.float32)
    y = jax.random.normal(ky, (B, condition_dim), jnp.float32)

    z, logdet = forward(kparams, x, y)
    jax.block_until_ready((z, logdet))
    assert z.shape == (B, input_dim) and logdet.shape == (B,)

    # Tight check against a reference mirroring the kernel's bf16 MXU precision.
    z_m, ld_m = reference_forward(params, x, y, half_dim,
                                  s_acts, 'Tanh', t_acts, None, mxu_dtype=jnp.bfloat16)
    assert bool(jnp.allclose(z, z_m, atol=1e-3, rtol=1e-3)), "z mismatch (bf16-mirror ref)"
    assert bool(jnp.allclose(logdet, ld_m, atol=1e-3, rtol=1e-3)), "logdet mismatch (bf16-mirror ref)"

    # Loose semantic check against the pure-f32 PyTorch-style reference.
    z_f, ld_f = reference_forward(params, x, y, half_dim,
                                  s_acts, 'Tanh', t_acts, None, mxu_dtype=None)
    assert bool(jnp.allclose(z, z_f, atol=1e-1, rtol=1e-1)), "z mismatch (f32 ref)"
    assert bool(jnp.allclose(logdet, ld_f, atol=1e-1, rtol=1e-1)), "logdet mismatch (f32 ref)"

    # Ragged batch (padding / lane-mask path): B not a multiple of 128.
    Br = 200
    zr, ldr = forward(kparams, x[:Br], y[:Br])
    jax.block_until_ready((zr, ldr))
    assert bool(jnp.allclose(zr, z_m[:Br], atol=1e-3, rtol=1e-3)), "ragged z mismatch"
    assert bool(jnp.allclose(ldr, ld_m[:Br], atol=1e-3, rtol=1e-3)), "ragged logdet mismatch"

    # ---- Config 2: asymmetric net widths + mixed per-net activations ----
    # (exercises the static row-split activation path inside the fused layers).
    s_hidden2, t_hidden2 = [24, 16], [40, 16]
    s_acts2, t_acts2 = ['ELU', 'ReLU'], ['LeakyReLU', 'ReLU']
    init2, pack2, fwd2 = make_affine_coupling(
        input_dim, condition_dim,
        s_hidden2, s_acts2, 'Tanh',
        t_hidden2, t_acts2, 'Sigmoid',
        batch_tile=128)
    params2 = init2(jax.random.PRNGKey(1))
    kparams2 = pack2(params2)
    z2, ld2 = fwd2(kparams2, x, y)
    jax.block_until_ready((z2, ld2))
    z2m, ld2m = reference_forward(params2, x, y, half_dim,
                                  s_acts2, 'Tanh', t_acts2, 'Sigmoid',
                                  mxu_dtype=jnp.bfloat16)
    assert bool(jnp.allclose(z2, z2m, atol=2e-3, rtol=2e-3)), "z mismatch (mixed-act config)"
    assert bool(jnp.allclose(ld2, ld2m, atol=2e-3, rtol=2e-3)), "logdet mismatch (mixed-act config)"

    print("KERNEL_OK")
</pallas_src>

<mosaic_0001>
module attributes {stable_mosaic.version = 11 : i64} {
  func.func @kernel(%arg0: i32, %arg1: memref<7x128xf32, #tpu.memory_space<vmem>>, %arg2: memref<4x128xf32, #tpu.memory_space<vmem>>, %arg3: memref<64x4xbf16, #tpu.memory_space<vmem>>, %arg4: memref<64x4xbf16, #tpu.memory_space<vmem>>, %arg5: memref<64x1xf32, #tpu.memory_space<vmem>>, %arg6: memref<64x64xbf16, #tpu.memory_space<vmem>>, %arg7: memref<64x1xf32, #tpu.memory_space<vmem>>, %arg8: memref<6x64xbf16, #tpu.memory_space<vmem>>, %arg9: memref<6x1xf32, #tpu.memory_space<vmem>>, %arg10: memref<7x128xf32, #tpu.memory_space<vmem>>, %arg11: memref<1x128xf32, #tpu.memory_space<vmem>>) attributes {dimension_semantics = [#tpu.dimension_semantics<parallel>], iteration_bounds = array<i64: 2>, scalar_prefetch = 0 : i64, scratch_operands = 0 : i64, tpu.core_type = #tpu.core_type<tc>, window_params = [{transform_indices = @transform_0, window_bounds = array<i64: 7, 128>}, {transform_indices = @transform_1, window_bounds = array<i64: 4, 128>}, {pipeline_mode = #tpu.pipeline_mode<synchronous>, transform_indices = @transform_2, window_bounds = array<i64: 64, 4>}, {pipeline_mode = #tpu.pipeline_mode<synchronous>, transform_indices = @transform_3, window_bounds = array<i64: 64, 4>}, {pipeline_mode = #tpu.pipeline_mode<synchronous>, transform_indices = @transform_4, window_bounds = array<i64: 64, 1>}, {pipeline_mode = #tpu.pipeline_mode<synchronous>, transform_indices = @transform_5, window_bounds = array<i64: 64, 64>}, {pipeline_mode = #tpu.pipeline_mode<synchronous>, transform_indices = @transform_6, window_bounds = array<i64: 64, 1>}, {pipeline_mode = #tpu.pipeline_mode<synchronous>, transform_indices = @transform_7, window_bounds = array<i64: 6, 64>}, {pipeline_mode = #tpu.pipeline_mode<synchronous>, transform_indices = @transform_8, window_bounds = array<i64: 6, 1>}, {transform_indices = @transform_9, window_bounds = array<i64: 7, 128>}, {transform_indices = @transform_10, window_bounds = array<i64: 1, 128>}]} {
    %c0 = arith.constant 0 : index
    %c0_0 = arith.constant 0 : index
    %0 = vector.load %arg1[%c0, %c0_0] : memref<7x128xf32, #tpu.memory_space<vmem>>, vector<4x128xf32>
    %c4 = arith.constant 4 : index
    %c0_1 = arith.constant 0 : index
    %1 = vector.load %arg1[%c4, %c0_1] : memref<7x128xf32, #tpu.memory_space<vmem>>, vector<3x128xf32>
    %c0_2 = arith.constant 0 : index
    %c0_3 = arith.constant 0 : index
    %2 = vector.load %arg2[%c0_2, %c0_3] : memref<4x128xf32, #tpu.memory_space<vmem>>, vector<4x128xf32>
    %c0_4 = arith.constant 0 : index
    %c0_5 = arith.constant 0 : index
    %3 = vector.load %arg3[%c0_4, %c0_5] : memref<64x4xbf16, #tpu.memory_space<vmem>>, vector<64x4xbf16>
    %c0_6 = arith.constant 0 : index
    %c0_7 = arith.constant 0 : index
    %4 = vector.load %arg4[%c0_6, %c0_7] : memref<64x4xbf16, #tpu.memory_space<vmem>>, vector<64x4xbf16>
    %5 = arith.truncf %0 : vector<4x128xf32> to vector<4x128xbf16>
    %cst = arith.constant dense<0.000000e+00> : vector<64x128xf32>
    %6 = tpu.matmul %3, %5, %cst {dimension_numbers = #tpu.dot_dimension_numbers<[1], [0], [0], [1], [0, 0, 1, 1], [], []>} : vector<64x4xbf16>, vector<4x128xbf16>, vector<64x128xf32> -> vector<64x128xf32>
    %7 = arith.truncf %2 : vector<4x128xf32> to vector<4x128xbf16>
    %cst_8 = arith.constant dense<0.000000e+00> : vector<64x128xf32>
    %8 = tpu.matmul %4, %7, %cst_8 {dimension_numbers = #tpu.dot_dimension_numbers<[1], [0], [0], [1], [0, 0, 1, 1], [], []>} : vector<64x4xbf16>, vector<4x128xbf16>, vector<64x128xf32> -> vector<64x128xf32>
    %9 = arith.addf %6, %8 : vector<64x128xf32>
    %c0_9 = arith.constant 0 : index
    %c0_10 = arith.constant 0 : index
    %10 = vector.load %arg5[%c0_9, %c0_10] : memref<64x1xf32, #tpu.memory_space<vmem>>, vector<64x1xf32>
    %11 = vector.broadcast %10 : vector<64x1xf32> to vector<64x128xf32>
    %12 = arith.addf %9, %11 : vector<64x128xf32>
    %cst_11 = arith.constant 0.000000e+00 : f32
    %13 = vector.broadcast %cst_11 : f32 to vector<64x128xf32>
    %14 = arith.maximumf %12, %13 : vector<64x128xf32>
    %c0_12 = arith.constant 0 : index
    %c0_13 = arith.constant 0 : index
    %15 = vector.load %arg6[%c0_12, %c0_13] : memref<64x64xbf16, #tpu.memory_space<vmem>>, vector<64x64xbf16>
    %c0_14 = arith.constant 0 : index
    %c0_15 = arith.constant 0 : index
    %16 = vector.load %arg7[%c0_14, %c0_15] : memref<64x1xf32, #tpu.memory_space<vmem>>, vector<64x1xf32>
    %17 = arith.truncf %14 : vector<64x128xf32> to vector<64x128xbf16>
    %cst_16 = arith.constant dense<0.000000e+00> : vector<64x128xf32>
    %18 = tpu.matmul %15, %17, %cst_16 {dimension_numbers = #tpu.dot_dimension_numbers<[1], [0], [0], [1], [0, 0, 1, 1], [], []>} : vector<64x64xbf16>, vector<64x128xbf16>, vector<64x128xf32> -> vector<64x128xf32>
    %19 = vector.broadcast %16 : vector<64x1xf32> to vector<64x128xf32>
    %20 = arith.addf %18, %19 : vector<64x128xf32>
    %cst_17 = arith.constant 0.000000e+00 : f32
    %21 = vector.broadcast %cst_17 : f32 to vector<64x128xf32>
    %22 = arith.maximumf %20, %21 : vector<64x128xf32>
    %c0_18 = arith.constant 0 : index
    %c0_19 = arith.constant 0 : index
    %23 = vector.load %arg8[%c0_18, %c0_19] : memref<6x64xbf16, #tpu.memory_space<vmem>>, vector<6x64xbf16>
    %c0_20 = arith.constant 0 : index
    %c0_21 = arith.constant 0 : index
    %24 = vector.load %arg9[%c0_20, %c0_21] : memref<6x1xf32, #tpu.memory_space<vmem>>, vector<6x1xf32>
    %25 = arith.truncf %22 : vector<64x128xf32> to vector<64x128xbf16>
    %cst_22 = arith.constant dense<0.000000e+00> : vector<6x128xf32>
    %26 = tpu.matmul %23, %25, %cst_22 {dimension_numbers = #tpu.dot_dimension_numbers<[1], [0], [0], [1], [0, 0, 1, 1], [], []>} : vector<6x64xbf16>, vector<64x128xbf16>, vector<6x128xf32> -> vector<6x128xf32>
    %27 = vector.broadcast %24 : vector<6x1xf32> to vector<6x128xf32>
    %28 = arith.addf %26, %27 : vector<6x128xf32>
    %29 = vector.extract_strided_slice %28 {offsets = [0, 0], sizes = [3, 128], strides = [1, 1]} : vector<6x128xf32> to vector<3x128xf32>
    %30 = math.tanh %29 : vector<3x128xf32>
    %31 = vector.extract_strided_slice %28 {offsets = [3, 0], sizes = [3, 128], strides = [1, 1]} : vector<6x128xf32> to vector<3x128xf32>
    %c0_23 = arith.constant 0 : index
    %c0_24 = arith.constant 0 : index
    %32 = vector.load %arg10[%c0_23, %c0_24] : memref<7x128xf32, #tpu.memory_space<vmem>>, vector<4x128xf32>
    tpu.vector_store %arg10[%c0_23, %c0_24], %0 {strides = array<i32>} : memref<7x128xf32, #tpu.memory_space<vmem>>, vector<4x128xf32>,
    %33 = math.exp %30 : vector<3x128xf32>
    %34 = arith.mulf %1, %33 : vector<3x128xf32>
    %35 = arith.addf %34, %31 : vector<3x128xf32>
    %c4_25 = arith.constant 4 : index
    %c0_26 = arith.constant 0 : index
    %36 = vector.load %arg10[%c4_25, %c0_26] : memref<7x128xf32, #tpu.memory_space<vmem>>, vector<3x128xf32>
    tpu.vector_store %arg10[%c4_25, %c0_26], %35 {strides = array<i32>} : memref<7x128xf32, #tpu.memory_space<vmem>>, vector<3x128xf32>,
    %cst_27 = arith.constant dense<0.000000e+00> : vector<128xf32>
    %37 = vector.multi_reduction <add>, %30, %cst_27 [0] : vector<3x128xf32> to vector<128xf32>
    %38 = vector.shape_cast %37 : vector<128xf32> to vector<1x128xf32>
    %c0_28 = arith.constant 0 : index
    %c0_29 = arith.constant 0 : index
    %39 = vector.load %arg11[%c0_28, %c0_29] : memref<1x128xf32, #tpu.memory_space<vmem>>, vector<1x128xf32>
    tpu.vector_store %arg11[%c0_28, %c0_29], %38 {strides = array<i32>} : memref<1x128xf32, #tpu.memory_space<vmem>>, vector<1x128xf32>,
    return
  }
  func.func @transform_0(%arg0: i32) -> (i32, i32) {
    %c0_i32 = arith.constant 0 : i32
    %c0_i32_0 = arith.constant 0 : i32
    return %c0_i32, %arg0 : i32, i32
  }
  func.func @transform_1(%arg0: i32) -> (i32, i32) {
    %c0_i32 = arith.constant 0 : i32
    %c0_i32_0 = arith.constant 0 : i32
    return %c0_i32, %arg0 : i32, i32
  }
  func.func @transform_2(%arg0: i32) -> (i32, i32) {
    %c0_i32 = arith.constant 0 : i32
    %c0_i32_0 = arith.constant 0 : i32
    %c0_i32_1 = arith.constant 0 : i32
    return %c0_i32, %c0_i32_0 : i32, i32
  }
  func.func @transform_3(%arg0: i32) -> (i32, i32) {
    %c0_i32 = arith.constant 0 : i32
    %c0_i32_0 = arith.constant 0 : i32
    %c0_i32_1 = arith.constant 0 : i32
    return %c0_i32, %c0_i32_0 : i32, i32
  }
  func.func @transform_4(%arg0: i32) -> (i32, i32) {
    %c0_i32 = arith.constant 0 : i32
    %c0_i32_0 = arith.constant 0 : i32
    %c0_i32_1 = arith.constant 0 : i32
    return %c0_i32, %c0_i32_0 : i32, i32
  }
  func.func @transform_5(%arg0: i32) -> (i32, i32) {
    %c0_i32 = arith.constant 0 : i32
    %c0_i32_0 = arith.constant 0 : i32
    %c0_i32_1 = arith.constant 0 : i32
    return %c0_i32, %c0_i32_0 : i32, i32
  }
  func.func @transform_6(%arg0: i32) -> (i32, i32) {
    %c0_i32 = arith.constant 0 : i32
    %c0_i32_0 = arith.constant 0 : i32
    %c0_i32_1 = arith.constant 0 : i32
    return %c0_i32, %c0_i32_0 : i32, i32
  }
  func.func @transform_7(%arg0: i32) -> (i32, i32) {
    %c0_i32 = arith.constant 0 : i32
    %c0_i32_0 = arith.constant 0 : i32
    %c0_i32_1 = arith.constant 0 : i32
    return %c0_i32, %c0_i32_0 : i32, i32
  }
  func.func @transform_8(%arg0: i32) -> (i32, i32) {
    %c0_i32 = arith.constant 0 : i32
    %c0_i32_0 = arith.constant 0 : i32
    %c0_i32_1 = arith.constant 0 : i32
    return %c0_i32, %c0_i32_0 : i32, i32
  }
  func.func @transform_9(%arg0: i32) -> (i32, i32) {
    %c0_i32 = arith.constant 0 : i32
    %c0_i32_0 = arith.constant 0 : i32
    return %c0_i32, %arg0 : i32, i32
  }
  func.func @transform_10(%arg0: i32) -> (i32, i32) {
    %c0_i32 = arith.constant 0 : i32
    %c0_i32_0 = arith.constant 0 : i32
    return %c0_i32, %arg0 : i32, i32
  }
}

</mosaic_0001>

<llo_original>
// kernel: forward.1
$region0: #{forward.1}
  #allocation0 [shape = 'u32[]', space=smem, size = 0x4, offset = 0x4, fixed_abs, tag = 'smem constant byte address 0x4 - core index']
  #allocation1 [shape = 'u32[144,128]{1,0:T(1,128)}', space=vmem, size = 0x12000, scoped, tag = 'internal scratch']
  %s0 = inlined_call_operand.vmem [shape: f32[7,256], index: 0, kind: input, shape index: {}]
  %s1 = inlined_call_operand.vmem [shape: f32[4,256], index: 1, kind: input, shape index: {}]
  %s2 = inlined_call_operand.vmem [shape: bf16[64,4], index: 2, kind: input, shape index: {}]
  %s3 = inlined_call_operand.vmem [shape: bf16[64,4], index: 3, kind: input, shape index: {}]
  %s4 = inlined_call_operand.vmem [shape: f32[64,1], index: 4, kind: input, shape index: {}]
  %s5 = inlined_call_operand.vmem [shape: bf16[64,64], index: 5, kind: input, shape index: {}]
  %s6 = inlined_call_operand.vmem [shape: f32[64,1], index: 6, kind: input, shape index: {}]
  %s7 = inlined_call_operand.vmem [shape: bf16[6,64], index: 7, kind: input, shape index: {}]
  %s8 = inlined_call_operand.vmem [shape: f32[6,1], index: 8, kind: input, shape index: {}]
  %s9 = inlined_call_operand.hbm [shape: f32[7,256], index: 9, kind: output, shape index: {0}]
  %s10 = inlined_call_operand.hbm [shape: f32[1,256], index: 10, kind: output, shape index: {1}]
  %11 = xla_tuple %s9, %s10
  %s12 = sld [smem:[#allocation0]]
  $region77: #{forward.1} parent=0
    _
  %s14 = ssub.s32 1, %s12
  %s15 = scalar_select 0, %s14, %s12
  $region1: #{forward.1} parent=0
    #allocation2 [shape = 'u8[8192]{0}', space=vmem, size = 0x2000, scoped, tag = 'output window, operand 0']
    #allocation3 [shape = 's32[2]{0}', space=sflag, size = 0x8, scoped, tag = 'scoped memory for forward.1']
    #allocation4 [shape = 'u8[1024]{0}', space=vmem, size = 0x400, scoped, tag = 'output window, operand 1']
    #allocation5 [shape = 's32[2]{0}', space=sflag, size = 0x8, scoped, tag = 'scoped memory for forward.1']
    %16 = vsyncpa [#allocation3], 0
    %s17 = scalar_lea.sflag [#allocation3], 1
    %18 = vsyncpa %s17, 0
    %19 = vsyncpa [#allocation5], 0
    %s20 = scalar_lea.sflag [#allocation5], 1
    %21 = vsyncpa %s20, 0
    loop: start=0, step=1, limit=4
    $region2: #{forward.1} parent=1 // loop_pre_header
      _
    $region3: #{forward.1} parent=1 // loop_header
      %s23 = sphi 0, %s27
      %p24 = scmp.ge.s32.totalorder %s23, 4
      %s33 = sphi 0, %s35
      %s36 = sphi 0, %s33
      %s37 = sphi 0, %s36
      %s53 = sphi 0, %s37
      %s59 = sphi 0, %s61
      %s62 = sphi 0, %s59
      %s63 = sphi 0, %s62
      %s79 = sphi 0, %s63
      %s83 = sphi 0, %s83
      %s85 = sphi 0, %s83
      %s86 = sphi 0, %s85
      %s100 = sphi 0, %s86
      %s104 = sphi 0, %s104
      %s106 = sphi 0, %s104
      %s107 = sphi 0, %s106
      %s121 = sphi 0, %s107
      %s125 = sphi 0, %s125
      %s127 = sphi 0, %s125
      %s128 = sphi 0, %s127
      %s142 = sphi 0, %s128
      %s146 = sphi 0, %s146
      %s148 = sphi 0, %s146
      %s149 = sphi 0, %s148
      %s163 = sphi 0, %s149
      %s167 = sphi 0, %s167
      %s169 = sphi 0, %s167
      %s170 = sphi 0, %s169
      %s184 = sphi 0, %s170
      %s188 = sphi 0, %s188
      %s190 = sphi 0, %s188
      %s191 = sphi 0, %s190
      %s205 = sphi 0, %s191
      %s209 = sphi 0, %s209
      %s211 = sphi 0, %s209
      %s212 = sphi 0, %s211
      %s226 = sphi 0, %s212
      %s232 = sphi 0, %s234
      %s235 = sphi 0, %s232
      %s236 = sphi 0, %s235
      %s252 = sphi 0, %s236
      %s258 = sphi 0, %s260
      %s261 = sphi 0, %s258
      %s262 = sphi 0, %s261
      %s278 = sphi 0, %s262
    $region4: #{forward.1} parent=1 // loop_header_branch
      %26 = sbr.rel (%p24) target = $region8
    $region5: #{forward.1} parent=1 // loop_body
      %s28 = ssub.s32 %s23, 1
      %s29 = ssub.s32 %s23, 2
      %s30 = sadd.s32 %s23, 1
      %s31 = ssub.s32 %s23, %s30
      %p32 = scmp.eq.s32.totalorder %s31, 0
      %s34 = sadd.s32 %s33, 1
      %s35 = scalar_select %p32, %s33, %s34
      %p38 = pneg %p32
      %p39 = scmp.eq.s32.totalorder %s23, 1
      %p40 = por %p38, %p39
      %p41 = scmp.ne.s32.totalorder %s33, %s36
      %p42 = scmp.eq.s32.totalorder %s23, 0
      %p43 = por %p41, %p42
      %p44 = scmp.ne.s32.totalorder %s33, %s36
      %p45 = scmp.eq.s32.totalorder %s28, 1
      %p46 = por %p44, %p45
      %p47 = scmp.ne.s32.totalorder %s36, %s37
      %p48 = scmp.eq.s32.totalorder %s28, 0
      %p49 = por %p47, %p48
      %p50 = scmp.ne.s32.totalorder %s36, %s37
      %p51 = scmp.eq.s32.totalorder %s29, 1
      %p52 = por %p50, %p51
      %p54 = scmp.ne.s32.totalorder %s37, %s53
      %p55 = scmp.eq.s32.totalorder %s29, 0
      %p56 = por %p54, %p55
      %s57 = ssub.s32 %s23, %s30
      %p58 = scmp.eq.s32.totalorder %s57, 0
      %s60 = sadd.s32 %s59, 1
      %s61 = scalar_select %p58, %s59, %s60
      %p64 = pneg %p58
      %p65 = scmp.eq.s32.totalorder %s23, 1
      %p66 = por %p64, %p65
      %p67 = scmp.ne.s32.totalorder %s59, %s62
      %p68 = scmp.eq.s32.totalorder %s23, 0
      %p69 = por %p67, %p68
      %p70 = scmp.ne.s32.totalorder %s59, %s62
      %p71 = scmp.eq.s32.totalorder %s28, 1
      %p72 = por %p70, %p71
      %p73 = scmp.ne.s32.totalorder %s62, %s63
      %p74 = scmp.eq.s32.totalorder %s28, 0
      %p75 = por %p73, %p74
      %p76 = scmp.ne.s32.totalorder %s62, %s63
      %p77 = scmp.eq.s32.totalorder %s29, 1
      %p78 = por %p76, %p77
      %p80 = scmp.ne.s32.totalorder %s63, %s79
      %p81 = scmp.eq.s32.totalorder %s29, 0
      %p82 = por %p80, %p81
      %s84 = sadd.s32 %s83, 1
      %p87 = scmp.eq.s32.totalorder %s23, 1
      %p88 = scmp.ne.s32.totalorder %s83, %s85
      %p89 = scmp.eq.s32.totalorder %s23, 0
      %p90 = por %p88, %p89
      %p91 = scmp.ne.s32.totalorder %s83, %s85
      %p92 = scmp.eq.s32.totalorder %s28, 1
      %p93 = por %p91, %p92
      %p94 = scmp.ne.s32.totalorder %s85, %s86
      %p95 = scmp.eq.s32.totalorder %s28, 0
      %p96 = por %p94, %p95
      %p97 = scmp.ne.s32.totalorder %s85, %s86
      %p98 = scmp.eq.s32.totalorder %s29, 1
      %p99 = por %p97, %p98
      %p101 = scmp.ne.s32.totalorder %s86, %s100
      %p102 = scmp.eq.s32.totalorder %s29, 0
      %p103 = por %p101, %p102
      %s105 = sadd.s32 %s104, 1
      %p108 = scmp.eq.s32.totalorder %s23, 1
      %p109 = scmp.ne.s32.totalorder %s104, %s106
      %p110 = scmp.eq.s32.totalorder %s23, 0
      %p111 = por %p109, %p110
      %p112 = scmp.ne.s32.totalorder %s104, %s106
      %p113 = scmp.eq.s32.totalorder %s28, 1
      %p114 = por %p112, %p113
      %p115 = scmp.ne.s32.totalorder %s106, %s107
      %p116 = scmp.eq.s32.totalorder %s28, 0
      %p117 = por %p115, %p116
      %p118 = scmp.ne.s32.totalorder %s106, %s107
      %p119 = scmp.eq.s32.totalorder %s29, 1
      %p120 = por %p118, %p119
      %p122 = scmp.ne.s32.totalorder %s107, %s121
      %p123 = scmp.eq.s32.totalorder %s29, 0
      %p124 = por %p122, %p123
      %s126 = sadd.s32 %s125, 1
      %p129 = scmp.eq.s32.totalorder %s23, 1
      %p130 = scmp.ne.s32.totalorder %s125, %s127
      %p131 = scmp.eq.s32.totalorder %s23, 0
      %p132 = por %p130, %p131
      %p133 = scmp.ne.s32.totalorder %s125, %s127
      %p134 = scmp.eq.s32.totalorder %s28, 1
      %p135 = por %p133, %p134
      %p136 = scmp.ne.s32.totalorder %s127, %s128
      %p137 = scmp.eq.s32.totalorder %s28, 0
      %p138 = por %p136, %p137
      %p139 = scmp.ne.s32.totalorder %s127, %s128
      %p140 = scmp.eq.s32.totalorder %s29, 1
      %p141 = por %p139, %p140
      %p143 = scmp.ne.s32.totalorder %s128, %s142
      %p144 = scmp.eq.s32.totalorder %s29, 0
      %p145 = por %p143, %p144
      %s147 = sadd.s32 %s146, 1
      %p150 = scmp.eq.s32.totalorder %s23, 1
      %p151 = scmp.ne.s32.totalorder %s146, %s148
      %p152 = scmp.eq.s32.totalorder %s23, 0
      %p153 = por %p151, %p152
      %p154 = scmp.ne.s32.totalorder %s146, %s148
      %p155 = scmp.eq.s32.totalorder %s28, 1
      %p156 = por %p154, %p155
      %p157 = scmp.ne.s32.totalorder %s148, %s149
      %p158 = scmp.eq.s32.totalorder %s28, 0
      %p159 = por %p157, %p158
      %p160 = scmp.ne.s32.totalorder %s148, %s149
      %p161 = scmp.eq.s32.totalorder %s29, 1
      %p162 = por %p160, %p161
      %p164 = scmp.ne.s32.totalorder %s149, %s163
      %p165 = scmp.eq.s32.totalorder %s29, 0
      %p166 = por %p164, %p165
      %s168 = sadd.s32 %s167, 1
      %p171 = scmp.eq.s32.totalorder %s23, 1
      %p172 = scmp.ne.s32.totalorder %s167, %s169
      %p173 = scmp.eq.s32.totalorder %s23, 0
      %p174 = por %p172, %p173
      %p175 = scmp.ne.s32.totalorder %s167, %s169
      %p176 = scmp.eq.s32.totalorder %s28, 1
      %p177 = por %p175, %p176
      %p178 = scmp.ne.s32.totalorder %s169, %s170
      %p179 = scmp.eq.s32.totalorder %s28, 0
      %p180 = por %p178, %p179
      %p181 = scmp.ne.s32.totalorder %s169, %s170
      %p182 = scmp.eq.s32.totalorder %s29, 1
      %p183 = por %p181, %p182
      %p185 = scmp.ne.s32.totalorder %s170, %s184
      %p186 = scmp.eq.s32.totalorder %s29, 0
      %p187 = por %p185, %p186
      %s189 = sadd.s32 %s188, 1
      %p192 = scmp.eq.s32.totalorder %s23, 1
      %p193 = scmp.ne.s32.totalorder %s188, %s190
      %p194 = scmp.eq.s32.totalorder %s23, 0
      %p195 = por %p193, %p194
      %p196 = scmp.ne.s32.totalorder %s188, %s190
      %p197 = scmp.eq.s32.totalorder %s28, 1
      %p198 = por %p196, %p197
      %p199 = scmp.ne.s32.totalorder %s190, %s191
      %p200 = scmp.eq.s32.totalorder %s28, 0
      %p201 = por %p199, %p200
      %p202 = scmp.ne.s32.totalorder %s190, %s191
      %p203 = scmp.eq.s32.totalorder %s29, 1
      %p204 = por %p202, %p203
      %p206 = scmp.ne.s32.totalorder %s191, %s205
      %p207 = scmp.eq.s32.totalorder %s29, 0
      %p208 = por %p206, %p207
      %s210 = sadd.s32 %s209, 1
      %p213 = scmp.eq.s32.totalorder %s23, 1
      %p214 = scmp.ne.s32.totalorder %s209, %s211
      %p215 = scmp.eq.s32.totalorder %s23, 0
      %p216 = por %p214, %p215
      %p217 = scmp.ne.s32.totalorder %s209, %s211
      %p218 = scmp.eq.s32.totalorder %s28, 1
      %p219 = por %p217, %p218
      %p220 = scmp.ne.s32.totalorder %s211, %s212
      %p221 = scmp.eq.s32.totalorder %s28, 0
      %p222 = por %p220, %p221
      %p223 = scmp.ne.s32.totalorder %s211, %s212
      %p224 = scmp.eq.s32.totalorder %s29, 1
      %p225 = por %p223, %p224
      %p227 = scmp.ne.s32.totalorder %s212, %s226
      %p228 = scmp.eq.s32.totalorder %s29, 0
      %p229 = por %p227, %p228
      %s230 = ssub.s32 %s23, %s30
      %p231 = scmp.eq.s32.totalorder %s230, 0
      %s233 = sadd.s32 %s232, 1
      %s234 = scalar_select %p231, %s232, %s233
      %p237 = pneg %p231
      %p238 = scmp.eq.s32.totalorder %s23, 1
      %p239 = por %p237, %p238
      %p240 = scmp.ne.s32.totalorder %s232, %s235
      %p241 = scmp.eq.s32.totalorder %s23, 0
      %p242 = por %p240, %p241
      %p243 = scmp.ne.s32.totalorder %s232, %s235
      %p244 = scmp.eq.s32.totalorder %s28, 1
      %p245 = por %p243, %p244
      %p246 = scmp.ne.s32.totalorder %s235, %s236
      %p247 = scmp.eq.s32.totalorder %s28, 0
      %p248 = por %p246, %p247
      %p249 = scmp.ne.s32.totalorder %s235, %s236
      %p250 = scmp.eq.s32.totalorder %s29, 1
      %p251 = por %p249, %p250
      %p253 = scmp.ne.s32.totalorder %s236, %s252
      %p254 = scmp.eq.s32.totalorder %s29, 0
      %p255 = por %p253, %p254
      %s256 = ssub.s32 %s23, %s30
      %p257 = scmp.eq.s32.totalorder %s256, 0
      %s259 = sadd.s32 %s258, 1
      %s260 = scalar_select %p257, %s258, %s259
      %p263 = pneg %p257
      %p264 = scmp.eq.s32.totalorder %s23, 1
      %p265 = por %p263, %p264
      %p266 = scmp.ne.s32.totalorder %s258, %s261
      %p267 = scmp.eq.s32.totalorder %s23, 0
      %p268 = por %p266, %p267
      %p269 = scmp.ne.s32.totalorder %s258, %s261
      %p270 = scmp.eq.s32.totalorder %s28, 1
      %p271 = por %p269, %p270
      %p272 = scmp.ne.s32.totalorder %s261, %s262
      %p273 = scmp.eq.s32.totalorder %s28, 0
      %p274 = por %p272, %p273
      %p275 = scmp.ne.s32.totalorder %s261, %s262
      %p276 = scmp.eq.s32.totalorder %s29, 1
      %p277 = por %p275, %p276
      %p279 = scmp.ne.s32.totalorder %s262, %s278
      %p280 = scmp.eq.s32.totalorder %s29, 0
      %p281 = por %p279, %p280
      %p282 = scmp.le.s32.totalorder 1, %s23
      %p283 = scmp.lt.s32.totalorder %s23, 3
      %p284 = pnand %p282, %p283
      %p285 = pneg %p284
      // Predicated region
      $region9: #{forward.1} parent=5 // pred_check
        _
      $region10: #{forward.1} parent=5 // pred_check_branch
        %287 = sbr.rel (%p284) target = $region12
      $region11: #{forward.1} parent=5 // pred_region
        %s288 = ssub.s32 %s23, 1
        // Predicated region
        $region13: #{forward.1} parent=11 // pred_check
          %p289 = pneg %p96
        $region14: #{forward.1} parent=11 // pred_check_branch
          %291 = sbr.rel (%p289) target = $region16
        $region15: #{forward.1} parent=11 // pred_region
          _
        $region16: #{forward.1} parent=11 // pred_fallthru
          _
        // Predicated region
        $region17: #{forward.1} parent=11 // pred_check
          %p292 = pneg %p117
        $region18: #{forward.1} parent=11 // pred_check_branch
          %294 = sbr.rel (%p292) target = $region20
        $region19: #{forward.1} parent=11 // pred_region
          _
        $region20: #{forward.1} parent=11 // pred_fallthru
          _
        // Predicated region
        $region21: #{forward.1} parent=11 // pred_check
          %p295 = pneg %p138
        $region22: #{forward.1} parent=11 // pred_check_branch
          %297 = sbr.rel (%p295) target = $region24
        $region23: #{forward.1} parent=11 // pred_region
          _
        $region24: #{forward.1} parent=11 // pred_fallthru
          _
        // Predicated region
        $region25: #{forward.1} parent=11 // pred_check
          %p298 = pneg %p159
        $region26: #{forward.1} parent=11 // pred_check_branch
          %300 = sbr.rel (%p298) target = $region28
        $region27: #{forward.1} parent=11 // pred_region
          _
        $region28: #{forward.1} parent=11 // pred_fallthru
          _
        // Predicated region
        $region29: #{forward.1} parent=11 // pred_check
          %p301 = pneg %p180
        $region30: #{forward.1} parent=11 // pred_check_branch
          %303 = sbr.rel (%p301) target = $region32
        $region31: #{forward.1} parent=11 // pred_region
          _
        $region32: #{forward.1} parent=11 // pred_fallthru
          _
        // Predicated region
        $region33: #{forward.1} parent=11 // pred_check
          %p304 = pneg %p201
        $region34: #{forward.1} parent=11 // pred_check_branch
          %306 = sbr.rel (%p304) target = $region36
        $region35: #{forward.1} parent=11 // pred_region
          _
        $region36: #{forward.1} parent=11 // pred_fallthru
          _
        // Predicated region
        $region37: #{forward.1} parent=11 // pred_check
          %p307 = pneg %p222
        $region38: #{forward.1} parent=11 // pred_check_branch
          %309 = sbr.rel (%p307) target = $region40
        $region39: #{forward.1} parent=11 // pred_region
          _
        $region40: #{forward.1} parent=11 // pred_fallthru
          _
      $region12: #{forward.1} parent=5 // pred_fallthru
        _
      %p310 = scmp.lt.s32.totalorder %s23, 2
      // Predicated region
      $region41: #{forward.1} parent=5 // pred_check
        %p311 = pneg %p310
      $region42: #{forward.1} parent=5 // pred_check_branch
        %313 = sbr.rel (%p311) target = $region44
      $region43: #{forward.1} parent=5 // pred_region
        // Predicated region
        $region45: #{forward.1} parent=43 // pred_check
          %p314 = pneg %p43
        $region46: #{forward.1} parent=43 // pred_check_branch
          %316 = sbr.rel (%p314) target = $region48
        $region47: #{forward.1} parent=43 // pred_region
          %p317 = scmp.lt.s32.totalorder %s23, 1
          %s318 = scalar_select %p317, %s23, 1
          %s319 = smul.addr %s318, 8
          %s320 = scalar_lea.vmem %s0, %s319
        $region48: #{forward.1} parent=43 // pred_fallthru
          _
        // Predicated region
        $region49: #{forward.1} parent=43 // pred_check
          %p321 = pneg %p69
        $region50: #{forward.1} parent=43 // pred_check_branch
          %323 = sbr.rel (%p321) target = $region52
        $region51: #{forward.1} parent=43 // pred_region
          %p324 = scmp.lt.s32.totalorder %s23, 1
          %s325 = scalar_select %p324, %s23, 1
          %s326 = smul.addr %s325, 4
          %s327 = scalar_lea.vmem %s1, %s326
        $region52: #{forward.1} parent=43 // pred_fallthru
          _
      $region44: #{forward.1} parent=5 // pred_fallthru
        _
      %p328 = scmp.le.s32.totalorder 1, %s23
      %p329 = scmp.lt.s32.totalorder %s23, 3
      %p330 = pnand %p328, %p329
      %p331 = pneg %p330
      // Predicated region
      $region53: #{forward.1} parent=5 // pred_check
        _
      $region54: #{forward.1} parent=5 // pred_check_branch
        %333 = sbr.rel (%p330) target = $region56
      $region55: #{forward.1} parent=5 // pred_region
        %s334 = ssub.s32 %s23, 1
        %p335 = scmp.lt.s32.totalorder %s28, 1
        %s336 = scalar_select %p335, %s28, 1
        %s337 = smul.addr %s336, 8
        %s338 = scalar_lea.vmem %s0, %s337
        %p339 = pneg %p49
        %p340 = pneg %p46
        %p341 = scmp.lt.s32.totalorder %s28, 1
        %s342 = scalar_select %p341, %s28, 1
        %s343 = smul.addr %s342, 4
        %s344 = scalar_lea.vmem %s1, %s343
        %p345 = pneg %p75
        %p346 = pneg %p72
        %p347 = pneg %p96
        %p348 = pneg %p93
        %p349 = pneg %p117
        %p350 = pneg %p114
        %p351 = pneg %p138
        %p352 = pneg %p135
        %p353 = pneg %p159
        %p354 = pneg %p156
        %p355 = pneg %p180
        %p356 = pneg %p177
        %p357 = pneg %p201
        %p358 = pneg %p198
        %p359 = pneg %p222
        %p360 = pneg %p219
        %p361 = pneg %p248
        %p362 = pneg %p245
        %s363 = sand.u32 %s235, 1
        %s364 = scalar_lea.sflag [#allocation3], %s363
        %s365 = sand.u32 %s235, 1
        %s366 = smul.addr %s365, 8
        %s367 = scalar_lea.vmem [#allocation2], %s366
        %p368 = pneg %p274
        %p369 = pneg %p271
        %s370 = sand.u32 %s261, 1
        %s371 = scalar_lea.sflag [#allocation5], %s370
        %s372 = sand.u32 %s261, 1
        %s373 = scalar_lea.vmem [#allocation4], %s372
        %p374 = scmp.lt.s32.totalorder %s28, 1
        %s375 = scalar_select %p374, %s28, 1
        %s376 = smul.addr %s375, 8
        %s377 = scalar_lea.vmem %s0, %s376
        %p378 = scmp.lt.s32.totalorder %s28, 1
        %s379 = scalar_select %p378, %s28, 1
        %s380 = smul.addr %s379, 4
        %s381 = scalar_lea.vmem %s1, %s380
        %v383 = vld [vmem:[%s377] sm:$0xf]
        %v384 = vld [vmem:[%s377 + $0x4] sm:$0x7]
        %v385 = vld [vmem:[%s381] sm:$0xf]
        %v386 = vld [vmem:[%s2] sm:$0xf]
        %v387 = vld [vmem:[%s2 + $0x4] sm:$0xf]
        %v388 = vld [vmem:[%s2 + $0x8] sm:$0xf]
        %v389 = vld [vmem:[%s2 + $0xc] sm:$0xf]
        %v390 = vld [vmem:[%s2 + $0x10] sm:$0xf]
        %v391 = vld [vmem:[%s2 + $0x14] sm:$0xf]
        %v392 = vld [vmem:[%s2 + $0x18] sm:$0xf]
        %v393 = vld [vmem:[%s2 + $0x1c] sm:$0xf]
        %v394 = vld [vmem:[%s3] sm:$0xf]
        %v395 = vld [vmem:[%s3 + $0x4] sm:$0xf]
        %v396 = vld [vmem:[%s3 + $0x8] sm:$0xf]
        %v397 = vld [vmem:[%s3 + $0xc] sm:$0xf]
        %v398 = vld [vmem:[%s3 + $0x10] sm:$0xf]
        %v399 = vld [vmem:[%s3 + $0x14] sm:$0xf]
        %v400 = vld [vmem:[%s3 + $0x18] sm:$0xf]
        %v401 = vld [vmem:[%s3 + $0x1c] sm:$0xf]
        %v402 = vpack.c.bf16 %v383, %v383
        %v403 = vpack.c.bf16 %v385, %v385
        %v412 = vunpack.c.l.b16 %v394
        %v413 = vunpack.c.l.b16 %v395
        %v414 = vunpack.c.l.b16 %v396
        %v415 = vunpack.c.l.b16 %v397
        %v416 = vunpack.c.l.b16 %v398
        %v417 = vunpack.c.l.b16 %v399
        %v418 = vunpack.c.l.b16 %v400
        %v419 = vunpack.c.l.b16 %v401
        %v420 = vpack.c.b16 %v413, %v412
        %v421 = vpack.c.b16 %v415, %v414
        %v422 = vpack.c.b16 %v417, %v416
        %v423 = vpack.c.b16 %v419, %v418
        %vm424 = vcmask 31744
        %v426 = vsel %vm424, %v420, 0
        %v429 = vsel %vm424, %v421, 0
        %v432 = vsel %vm424, %v422, 0
        %v435 = vsel %vm424, %v423, 0
        %vm437 = vcmask 1041408
        %v439 = vsel %vm437, %v403, 0
        %441 = vmatprep.subr.bf16.mxu0 0
        %442 = vmatpush1.bf16.msra.mxu0 %v439
        %443 = vmatprep.subr.bf16.mxu0 0
        %444 = vmatpush1.bf16.msra.mxu0 0
        %445 = vmatprep.subr.bf16.mxu0 0
        %446 = vmatpush1.bf16.msra.mxu0 0
        %447 = vmatprep.subr.bf16.mxu0 0
        %448 = vmatpush1.bf16.msra.mxu0 0
        %449 = vmatprep.subr.bf16.mxu0 0
        %450 = vmatpush1.bf16.msra.mxu0 0
        %451 = vmatprep.subr.bf16.mxu0 0
        %452 = vmatpush1.bf16.msra.mxu0 0
        %453 = vmatprep.subr.bf16.mxu0 0
        %454 = vmatpush1.bf16.msra.mxu0 0
        %455 = vmatprep.subr.bf16.mxu0 0
        %456 = vmatpush1.bf16.msra.mxu0 0
        %457 = vmatprep.subr.bf16.mxu0 0
        %458 = vmatpush1.bf16.msra.mxu0 0
        %459 = vmatprep.subr.bf16.mxu0 0
        %460 = vmatpush1.bf16.msra.mxu0 0
        %461 = vmatprep.subr.bf16.mxu0 0
        %462 = vmatpush1.bf16.msra.mxu0 0
        %463 = vmatprep.subr.bf16.mxu0 0
        %464 = vmatpush1.bf16.msra.mxu0 0
        %465 = vmatprep.subr.bf16.mxu0 0
        %466 = vmatpush1.bf16.msra.mxu0 0
        %467 = vmatprep.subr.bf16.mxu0 0
        %468 = vmatpush1.bf16.msra.mxu0 0
        %469 = vmatprep.subr.bf16.mxu0 0
        %470 = vmatpush1.bf16.msra.mxu0 0
        %471 = vmatprep.subr.bf16.mxu0 0
        %472 = vmatpush1.bf16.msra.mxu0 0
        %473 = vmatprep.mubr.bf16.mxu0 0
        %474 = vmatmul.mubr.bf16.gmra.mrb[0].mxu0 %v426
        %v475 = vpop.f32.mrb[0].mxu0
        %v476 = vadd.f32 0.0, %v475
        %v477 = vpop.f32.mrb[0].mxu0
        %v478 = vpop.f32.mrb[0].mxu0
        %v479 = vadd.f32 0.0, %v478
        %v480 = vpop.f32.mrb[0].mxu0
        %481 = vmatprep.mubr.bf16.mxu0 0
        %482 = vmatmul.mubr.bf16.gmra.mrb[0].mxu0 %v429
        %v483 = vpop.f32.mrb[0].mxu0
        %v484 = vadd.f32 0.0, %v483
        %v485 = vpop.f32.mrb[0].mxu0
        %v486 = vpop.f32.mrb[0].mxu0
        %v487 = vadd.f32 0.0, %v486
        %v488 = vpop.f32.mrb[0].mxu0
        %489 = vmatprep.mubr.bf16.mxu0 0
        %490 = vmatmul.mubr.bf16.gmra.mrb[0].mxu0 %v432
        %v491 = vpop.f32.mrb[0].mxu0
        %v492 = vadd.f32 0.0, %v491
        %v493 = vpop.f32.mrb[0].mxu0
        %v494 = vpop.f32.mrb[0].mxu0
        %v495 = vadd.f32 0.0, %v494
        %v496 = vpop.f32.mrb[0].mxu0
        %497 = vmatprep.mubr.bf16.mxu0 0
        %498 = vmatmul.mubr.bf16.gmra.mrb[0].mxu0 %v435
        %v499 = vpop.f32.mrb[0].mxu0
        %v500 = vadd.f32 0.0, %v499
        %v501 = vpop.f32.mrb[0].mxu0
        %v502 = vpop.f32.mrb[0].mxu0
        %v503 = vadd.f32 0.0, %v502
        %v504 = vpop.f32.mrb[0].mxu0
        %505 = vdwg.mxu0
        %v514 = vunpack.c.l.b16 %v386
        %v515 = vunpack.c.l.b16 %v387
        %v516 = vunpack.c.l.b16 %v388
        %v517 = vunpack.c.l.b16 %v389
        %v518 = vunpack.c.l.b16 %v390
        %v519 = vunpack.c.l.b16 %v391
        %v520 = vunpack.c.l.b16 %v392
        %v521 = vunpack.c.l.b16 %v393
        %v522 = vpack.c.b16 %v515, %v514
        %v523 = vpack.c.b16 %v517, %v516
        %v524 = vpack.c.b16 %v519, %v518
        %v525 = vpack.c.b16 %v521, %v520
        %v527 = vsel %vm424, %v522, 0
        %v530 = vsel %vm424, %v523, 0
        %v533 = vsel %vm424, %v524, 0
        %v536 = vsel %vm424, %v525, 0
        %v539 = vsel %vm437, %v402, 0
        %541 = vmatprep.subr.bf16.mxu0 0
        %542 = vmatpush1.bf16.msra.mxu0 %v539
        %543 = vmatprep.subr.bf16.mxu0 0
        %544 = vmatpush1.bf16.msra.mxu0 0
        %545 = vmatprep.subr.bf16.mxu0 0
        %546 = vmatpush1.bf16.msra.mxu0 0
        %547 = vmatprep.subr.bf16.mxu0 0
        %548 = vmatpush1.bf16.msra.mxu0 0
        %549 = vmatprep.subr.bf16.mxu0 0
        %550 = vmatpush1.bf16.msra.mxu0 0
        %551 = vmatprep.subr.bf16.mxu0 0
        %552 = vmatpush1.bf16.msra.mxu0 0
        %553 = vmatprep.subr.bf16.mxu0 0
        %554 = vmatpush1.bf16.msra.mxu0 0
        %555 = vmatprep.subr.bf16.mxu0 0
        %556 = vmatpush1.bf16.msra.mxu0 0
        %557 = vmatprep.subr.bf16.mxu0 0
        %558 = vmatpush1.bf16.msra.mxu0 0
        %559 = vmatprep.subr.bf16.mxu0 0
        %560 = vmatpush1.bf16.msra.mxu0 0
        %561 = vmatprep.subr.bf16.mxu0 0
        %562 = vmatpush1.bf16.msra.mxu0 0
        %563 = vmatprep.subr.bf16.mxu0 0
        %564 = vmatpush1.bf16.msra.mxu0 0
        %565 = vmatprep.subr.bf16.mxu0 0
        %566 = vmatpush1.bf16.msra.mxu0 0
        %567 = vmatprep.subr.bf16.mxu0 0
        %568 = vmatpush1.bf16.msra.mxu0 0
        %569 = vmatprep.subr.bf16.mxu0 0
        %570 = vmatpush1.bf16.msra.mxu0 0
        %571 = vmatprep.subr.bf16.mxu0 0
        %572 = vmatpush1.bf16.msra.mxu0 0
        %573 = vmatprep.mubr.bf16.mxu0 0
        %574 = vmatmul.mubr.bf16.gmra.mrb[0].mxu0 %v527
        %v575 = vpop.f32.mrb[0].mxu0
        %v576 = vadd.f32 %v476, %v575
        %v577 = vpop.f32.mrb[0].mxu0
        %v578 = vpop.f32.mrb[0].mxu0
        %v579 = vadd.f32 %v479, %v578
        %v580 = vpop.f32.mrb[0].mxu0
        %581 = vmatprep.mubr.bf16.mxu0 0
        %582 = vmatmul.mubr.bf16.gmra.mrb[0].mxu0 %v530
        %v583 = vpop.f32.mrb[0].mxu0
        %v584 = vadd.f32 %v484, %v583
        %v585 = vpop.f32.mrb[0].mxu0
        %v586 = vpop.f32.mrb[0].mxu0
        %v587 = vadd.f32 %v487, %v586
        %v588 = vpop.f32.mrb[0].mxu0
        %589 = vmatprep.mubr.bf16.mxu0 0
        %590 = vmatmul.mubr.bf16.gmra.mrb[0].mxu0 %v533
        %v591 = vpop.f32.mrb[0].mxu0
        %v592 = vadd.f32 %v492, %v591
        %v593 = vpop.f32.mrb[0].mxu0
        %v594 = vpop.f32.mrb[0].mxu0
        %v595 = vadd.f32 %v495, %v594
        %v596 = vpop.f32.mrb[0].mxu0
        %597 = vmatprep.mubr.bf16.mxu0 0
        %598 = vmatmul.mubr.bf16.gmra.mrb[0].mxu0 %v536
        %v599 = vpop.f32.mrb[0].mxu0
        %v600 = vadd.f32 %v500, %v599
        %v601 = vpop.f32.mrb[0].mxu0
        %v602 = vpop.f32.mrb[0].mxu0
        %v603 = vadd.f32 %v503, %v602
        %v604 = vpop.f32.mrb[0].mxu0
        %605 = vdwg.mxu0
        %v606 = vld [vmem:[%s4] sm:$0xff]
        %v607 = vld [vmem:[%s4 + $0x8] sm:$0xff]
        %v608 = vld [vmem:[%s4 + $0x10] sm:$0xff]
        %v609 = vld [vmem:[%s4 + $0x18] sm:$0xff]
        %v610 = vld [vmem:[%s4 + $0x20] sm:$0xff]
        %v611 = vld [vmem:[%s4 + $0x28] sm:$0xff]
        %v612 = vld [vmem:[%s4 + $0x30] sm:$0xff]
        %v613 = vld [vmem:[%s4 + $0x38] sm:$0xff]
        %615 = vset.pattern.permute.xlu0 0
        %616 = vperm.xlu0 %615, %v606
        %v617 = vpop.permute.xlu0 %616
        %620 = vset.pattern.permute.xlu0 0
        %621 = vperm.xlu0 %620, %v607
        %v622 = vpop.permute.xlu0 %621
        %625 = vset.pattern.permute.xlu0 0
        %626 = vperm.xlu0 %625, %v608
        %v627 = vpop.permute.xlu0 %626
        %630 = vset.pattern.permute.xlu0 0
        %631 = vperm.xlu0 %630, %v609
        %v632 = vpop.permute.xlu0 %631
        %635 = vset.pattern.permute.xlu0 0
        %636 = vperm.xlu0 %635, %v610
        %v637 = vpop.permute.xlu0 %636
        %640 = vset.pattern.permute.xlu0 0
        %641 = vperm.xlu0 %640, %v611
        %v642 = vpop.permute.xlu0 %641
        %645 = vset.pattern.permute.xlu0 0
        %646 = vperm.xlu0 %645, %v612
        %v647 = vpop.permute.xlu0 %646
        %650 = vset.pattern.permute.xlu0 0
        %651 = vperm.xlu0 %650, %v613
        %v652 = vpop.permute.xlu0 %651
        %v654 = vadd.f32 %v576, %v617
        %v655 = vadd.f32 %v579, %v622
        %v656 = vadd.f32 %v584, %v627
        %v657 = vadd.f32 %v587, %v632
        %v658 = vadd.f32 %v592, %v637
        %v659 = vadd.f32 %v595, %v642
        %v660 = vadd.f32 %v600, %v647
        %v661 = vadd.f32 %v603, %v652
        %v662 = vmax.f32 %v654, 0.0
        %v663 = vmax.f32 %v655, 0.0
        %v664 = vmax.f32 %v656, 0.0
        %v665 = vmax.f32 %v657, 0.0
        %v666 = vmax.f32 %v658, 0.0
        %v667 = vmax.f32 %v659, 0.0
        %v668 = vmax.f32 %v660, 0.0
        %v669 = vmax.f32 %v661, 0.0
        %v670 = vld [vmem:[%s5] sm:$0xf]
        %v671 = vld [vmem:[%s5 + $0x4] sm:$0xf]
        %v672 = vld [vmem:[%s5 + $0x8] sm:$0xf]
        %v673 = vld [vmem:[%s5 + $0xc] sm:$0xf]
        %v674 = vld [vmem:[%s5 + $0x10] sm:$0xf]
        %v675 = vld [vmem:[%s5 + $0x14] sm:$0xf]
        %v676 = vld [vmem:[%s5 + $0x18] sm:$0xf]
        %v677 = vld [vmem:[%s5 + $0x1c] sm:$0xf]
        %v678 = vld [vmem:[%s6] sm:$0xff]
        %v679 = vld [vmem:[%s6 + $0x8] sm:$0xff]
        %v680 = vld [vmem:[%s6 + $0x10] sm:$0xff]
        %v681 = vld [vmem:[%s6 + $0x18] sm:$0xff]
        %v682 = vld [vmem:[%s6 + $0x20] sm:$0xff]
        %v683 = vld [vmem:[%s6 + $0x28] sm:$0xff]
        %v684 = vld [vmem:[%s6 + $0x30] sm:$0xff]
        %v685 = vld [vmem:[%s6 + $0x38] sm:$0xff]
        %v686 = vpack.c.bf16 %v663, %v662
        %v687 = vpack.c.bf16 %v665, %v664
        %v688 = vpack.c.bf16 %v667, %v666
        %v689 = vpack.c.bf16 %v669, %v668
        %691 = vset.pattern.permute.xlu0 0
        %692 = vperm.xlu0 %691, %v678
        %v693 = vpop.permute.xlu0 %692
        %696 = vset.pattern.permute.xlu0 0
        %697 = vperm.xlu0 %696, %v679
        %v698 = vpop.permute.xlu0 %697
        %701 = vset.pattern.permute.xlu0 0
        %702 = vperm.xlu0 %701, %v680
        %v703 = vpop.permute.xlu0 %702
        %706 = vset.pattern.permute.xlu0 0
        %707 = vperm.xlu0 %706, %v681
        %v708 = vpop.permute.xlu0 %707
        %711 = vset.pattern.permute.xlu0 0
        %712 = vperm.xlu0 %711, %v682
        %v713 = vpop.permute.xlu0 %712
        %716 = vset.pattern.permute.xlu0 0
        %717 = vperm.xlu0 %716, %v683
        %v718 = vpop.permute.xlu0 %717
        %721 = vset.pattern.permute.xlu0 0
        %722 = vperm.xlu0 %721, %v684
        %v723 = vpop.permute.xlu0 %722
        %726 = vset.pattern.permute.xlu0 0
        %727 = vperm.xlu0 %726, %v685
        %v728 = vpop.permute.xlu0 %727
        %v738 = vunpack.c.l.b16 %v670
        %v739 = vunpack.c.l.b16 %v671
        %v740 = vunpack.c.l.b16 %v672
        %v741 = vunpack.c.l.b16 %v673
        %v742 = vunpack.c.l.b16 %v674
        %v743 = vunpack.c.l.b16 %v675
        %v744 = vunpack.c.l.b16 %v676
        %v745 = vunpack.c.l.b16 %v677
        %v746 = vpack.c.b16 %v739, %v738
        %v747 = vpack.c.b16 %v741, %v740
        %v748 = vpack.c.b16 %v743, %v742
        %v749 = vpack.c.b16 %v745, %v744
        %vm750 = vcmask 523264
        %v752 = vsel %vm750, %v746, 0
        %v755 = vsel %vm750, %v747, 0
        %v758 = vsel %vm750, %v748, 0
        %v761 = vsel %vm750, %v749, 0
        %763 = vmatprep.subr.bf16.mxu0 0
        %764 = vmatpush1.bf16.msra.mxu0 %v686
        %765 = vmatprep.subr.bf16.mxu0 0
        %766 = vmatpush1.bf16.msra.mxu0 %v687
        %767 = vmatprep.subr.bf16.mxu0 0
        %768 = vmatpush1.bf16.msra.mxu0 %v688
        %769 = vmatprep.subr.bf16.mxu0 0
        %770 = vmatpush1.bf16.msra.mxu0 %v689
        %771 = vmatprep.subr.bf16.mxu0 0
        %772 = vmatpush1.bf16.msra.mxu0 0
        %773 = vmatprep.subr.bf16.mxu0 0
        %774 = vmatpush1.bf16.msra.mxu0 0
        %775 = vmatprep.subr.bf16.mxu0 0
        %776 = vmatpush1.bf16.msra.mxu0 0
        %777 = vmatprep.subr.bf16.mxu0 0
        %778 = vmatpush1.bf16.msra.mxu0 0
        %779 = vmatprep.subr.bf16.mxu0 0
        %780 = vmatpush1.bf16.msra.mxu0 0
        %781 = vmatprep.subr.bf16.mxu0 0
        %782 = vmatpush1.bf16.msra.mxu0 0
        %783 = vmatprep.subr.bf16.mxu0 0
        %784 = vmatpush1.bf16.msra.mxu0 0
        %785 = vmatprep.subr.bf16.mxu0 0
        %786 = vmatpush1.bf16.msra.mxu0 0
        %787 = vmatprep.subr.bf16.mxu0 0
        %788 = vmatpush1.bf16.msra.mxu0 0
        %789 = vmatprep.subr.bf16.mxu0 0
        %790 = vmatpush1.bf16.msra.mxu0 0
        %791 = vmatprep.subr.bf16.mxu0 0
        %792 = vmatpush1.bf16.msra.mxu0 0
        %793 = vmatprep.subr.bf16.mxu0 0
        %794 = vmatpush1.bf16.msra.mxu0 0
        %795 = vmatprep.mubr.bf16.mxu0 0
        %796 = vmatmul.mubr.bf16.gmra.mrb[0].mxu0 %v752
        %v797 = vpop.f32.mrb[0].mxu0
        %v798 = vadd.f32 %v693, %v797
        %v799 = vpop.f32.mrb[0].mxu0
        %v800 = vpop.f32.mrb[0].mxu0
        %v801 = vadd.f32 %v698, %v800
        %v802 = vpop.f32.mrb[0].mxu0
        %803 = vmatprep.mubr.bf16.mxu0 0
        %804 = vmatmul.mubr.bf16.gmra.mrb[0].mxu0 %v755
        %v805 = vpop.f32.mrb[0].mxu0
        %v806 = vadd.f32 %v703, %v805
        %v807 = vpop.f32.mrb[0].mxu0
        %v808 = vpop.f32.mrb[0].mxu0
        %v809 = vadd.f32 %v708, %v808
        %v810 = vpop.f32.mrb[0].mxu0
        %811 = vmatprep.mubr.bf16.mxu0 0
        %812 = vmatmul.mubr.bf16.gmra.mrb[0].mxu0 %v758
        %v813 = vpop.f32.mrb[0].mxu0
        %v814 = vadd.f32 %v713, %v813
        %v815 = vpop.f32.mrb[0].mxu0
        %v816 = vpop.f32.mrb[0].mxu0
        %v817 = vadd.f32 %v718, %v816
        %v818 = vpop.f32.mrb[0].mxu0
        %819 = vmatprep.mubr.bf16.mxu0 0
        %820 = vmatmul.mubr.bf16.gmra.mrb[0].mxu0 %v761
        %v821 = vpop.f32.mrb[0].mxu0
        %v822 = vadd.f32 %v723, %v821
        %v823 = vpop.f32.mrb[0].mxu0
        %v824 = vpop.f32.mrb[0].mxu0
        %v825 = vadd.f32 %v728, %v824
        %v826 = vpop.f32.mrb[0].mxu0
        %827 = vdwg.mxu0
        %v828 = vmax.f32 %v798, 0.0
        %v829 = vmax.f32 %v801, 0.0
        %v830 = vmax.f32 %v806, 0.0
        %v831 = vmax.f32 %v809, 0.0
        %v832 = vmax.f32 %v814, 0.0
        %v833 = vmax.f32 %v817, 0.0
        %v834 = vmax.f32 %v822, 0.0
        %v835 = vmax.f32 %v825, 0.0
        %v836 = vld [vmem:[%s7] sm:$0x7]
        %v837 = vld [vmem:[%s8] sm:$0x3f]
        %v838 = vpack.c.bf16 %v829, %v828
        %v839 = vpack.c.bf16 %v831, %v830
        %v840 = vpack.c.bf16 %v833, %v832
        %v841 = vpack.c.bf16 %v835, %v834
        %843 = vset.pattern.permute.xlu0 0
        %844 = vperm.xlu0 %843, %v837
        %v845 = vpop.permute.xlu0 %844
        %v848 = vsel %vm750, %v836, 0
        %850 = vmatprep.subr.bf16.mxu0 0
        %851 = vmatpush1.bf16.msra.mxu0 %v838
        %852 = vmatprep.subr.bf16.mxu0 0
        %853 = vmatpush1.bf16.msra.mxu0 %v839
        %854 = vmatprep.subr.bf16.mxu0 0
        %855 = vmatpush1.bf16.msra.mxu0 %v840
        %856 = vmatprep.subr.bf16.mxu0 0
        %857 = vmatpush1.bf16.msra.mxu0 %v841
        %858 = vmatprep.subr.bf16.mxu0 0
        %859 = vmatpush1.bf16.msra.mxu0 0
        %860 = vmatprep.subr.bf16.mxu0 0
        %861 = vmatpush1.bf16.msra.mxu0 0
        %862 = vmatprep.subr.bf16.mxu0 0
        %863 = vmatpush1.bf16.msra.mxu0 0
        %864 = vmatprep.subr.bf16.mxu0 0
        %865 = vmatpush1.bf16.msra.mxu0 0
        %866 = vmatprep.subr.bf16.mxu0 0
        %867 = vmatpush1.bf16.msra.mxu0 0
        %868 = vmatprep.subr.bf16.mxu0 0
        %869 = vmatpush1.bf16.msra.mxu0 0
        %870 = vmatprep.subr.bf16.mxu0 0
        %871 = vmatpush1.bf16.msra.mxu0 0
        %872 = vmatprep.subr.bf16.mxu0 0
        %873 = vmatpush1.bf16.msra.mxu0 0
        %874 = vmatprep.subr.bf16.mxu0 0
        %875 = vmatpush1.bf16.msra.mxu0 0
        %876 = vmatprep.subr.bf16.mxu0 0
        %877 = vmatpush1.bf16.msra.mxu0 0
        %878 = vmatprep.subr.bf16.mxu0 0
        %879 = vmatpush1.bf16.msra.mxu0 0
        %880 = vmatprep.subr.bf16.mxu0 0
        %881 = vmatpush1.bf16.msra.mxu0 0
        %882 = vmatprep.mubr.bf16.mxu0 0
        %883 = vmatmul.mubr.bf16.gmra.mrb[0].mxu0 %v848
        %v884 = vpop.f32.mrb[0].mxu0
        %v885 = vadd.f32 %v845, %v884
        %v886 = vpop.f32.mrb[0].mxu0
        %v887 = vpop.f32.mrb[0].mxu0
        %v888 = vpop.f32.mrb[0].mxu0
        %889 = vdwg.mxu0
        %v890 = vtanh.pop %v885
        %891 = vst [vmem:[%s367] sm:$0xf] %v383
        %v892 = vmul.f32 %v890, 1.442695
        %v893 = vpow.pop %v892
        %v894 = vmul.f32 %v384, %v893
        %v896 = vrot.slane %v885, 3
        %v898 = vadd.f32 %v894, %v896
        %899 = vst [vmem:[%s367 + $0x4] sm:$0x7] %v898
        %vm900 = vcmask 1042432
        %v901 = vsel %vm900, %v890, 0.0
        %v902 = vrot.slane %v901, 4
        %v903 = vadd.f32 %v901, %v902
        %v904 = vrot.slane %v903, 2
        %v905 = vadd.f32 %v903, %v904
        %v906 = vrot.slane %v905, 1
        %v907 = vadd.f32 %v905, %v906
        %908 = vst [vmem:[%s373] sm:$0x1] %v907
        %s909 = sand.u32 %s235, 1
        %s910 = scalar_lea.sflag [#allocation3], %s909
        %s911 = sand.u32 %s235, 1
        %s912 = smul.addr %s911, 8
        %s913 = scalar_lea.vmem [#allocation2], %s912
        %s914 = sand.u32 %s261, 1
        %s915 = scalar_lea.sflag [#allocation5], %s914
        %s916 = sand.u32 %s261, 1
        %s917 = scalar_lea.vmem [#allocation4], %s916
        // Predicated region
        $region57: #{forward.1} parent=55 // pred_check
          %p918 = pneg %p245
        $region58: #{forward.1} parent=55 // pred_check_branch
          %920 = sbr.rel (%p918) target = $region60
        $region59: #{forward.1} parent=55 // pred_region
          %s922 = ssub.s32 128, 128
          %923 = vsyncadd %s910, %s922
          %s924 = smul.addr %s28, 128
          %s925 = scalar_lea.hbm %s9, %s924
          %s927 = sshll.u32 %s913, 4
          %s928 = int_to_ptr.vmem [resolvable:$true] %s927
          %930 = dma.vmem_to_hbm [thread:$0]  %s928, 128, %s925, %s910
        $region60: #{forward.1} parent=55 // pred_fallthru
          _
        // Predicated region
        $region61: #{forward.1} parent=55 // pred_check
          %p931 = pneg %p271
        $region62: #{forward.1} parent=55 // pred_check_branch
          %933 = sbr.rel (%p931) target = $region64
        $region63: #{forward.1} parent=55 // pred_region
          %s935 = ssub.s32 16, 16
          %936 = vsyncadd %s915, %s935
          %s937 = smul.addr %s28, 16
          %s938 = scalar_lea.hbm %s10, %s937
          %s940 = sshll.u32 %s917, 4
          %s941 = int_to_ptr.vmem [resolvable:$true] %s940
          %943 = dma.vmem_to_hbm [thread:$0]  %s941, 16, %s938, %s915
        $region64: #{forward.1} parent=55 // pred_fallthru
          _
      $region56: #{forward.1} parent=5 // pred_fallthru
        _
      %p944 = scmp.le.s32.totalorder 2, %s23
      // Predicated region
      $region65: #{forward.1} parent=5 // pred_check
        %p945 = pneg %p944
      $region66: #{forward.1} parent=5 // pred_check_branch
        %947 = sbr.rel (%p945) target = $region68
      $region67: #{forward.1} parent=5 // pred_region
        %s948 = ssub.s32 %s23, 2
        // Predicated region
        $region69: #{forward.1} parent=67 // pred_check
          %p949 = pneg %p251
        $region70: #{forward.1} parent=67 // pred_check_branch
          %951 = sbr.rel (%p949) target = $region72
        $region71: #{forward.1} parent=67 // pred_region
          %s952 = sand.u32 %s236, 1
          %s953 = scalar_lea.sflag [#allocation3], %s952
          %s954 = sand.u32 %s236, 1
          %s955 = smul.addr %s954, 8
          %s956 = scalar_lea.vmem [#allocation2], %s955
          %957 = dma.done %s953, 128
        $region72: #{forward.1} parent=67 // pred_fallthru
          _
        // Predicated region
        $region73: #{forward.1} parent=67 // pred_check
          %p958 = pneg %p277
        $region74: #{forward.1} parent=67 // pred_check_branch
          %960 = sbr.rel (%p958) target = $region76
        $region75: #{forward.1} parent=67 // pred_region
          %s961 = sand.u32 %s262, 1
          %s962 = scalar_lea.sflag [#allocation5], %s961
          %s963 = sand.u32 %s262, 1
          %s964 = scalar_lea.vmem [#allocation4], %s963
          %965 = dma.done %s962, 16
        $region76: #{forward.1} parent=67 // pred_fallthru
          _
      $region68: #{forward.1} parent=5 // pred_fallthru
        _
    $region6: #{forward.1} parent=1 // loop_footer
      %s27 = sadd.s32 1, %s23
    $region7: #{forward.1} parent=1 // loop_footer_branch
      %22 = sbr.rel target = $region3
    $region8: #{forward.1} parent=1 // loop_exit
      _
    %966 = vsyncpa [#allocation3], 1
    %s967 = scalar_lea.sflag [#allocation3], 1
    %968 = vsyncpa %s967, 1
    %969 = vsyncpa [#allocation5], 1
    %s970 = scalar_lea.sflag [#allocation5], 1
    %971 = vsyncpa %s970, 1

</llo_original>
